<compile_context>
chip_gen: v7x
topology: tpu7x:2x2x1
jax: 0.10.0
libtpu: 0.0.40
codegen_flags: <defaults>
</compile_context>

<pallas_src>
import functools

import jax
import jax.numpy as jnp
from jax.experimental import pallas as pl
from jax.experimental.pallas import tpu as pltpu


_TARGET_TILE_BYTES = 4 * 1024 * 1024   # ~4 MiB x tile per buffer (HBM-BW sweet spot)
_MAX_KBLOCK_BYTES = 8 * 1024           # per-row bytes per K-block when K-tiling
_LANE = 128


def _cdiv(a, b):
    return -(-a // b)


def _round_up(v, m):
    return _cdiv(v, m) * m


def _sublane_align(itemsize):
    # Packed-sublane minimum rows: 8 for 32-bit, 16 for bf16, 32 for 8-bit.
    return max(8, 32 // max(1, itemsize))


def _choose_block_rows(rows, row_vmem_bytes, itemsize):
    """Byte-based batch tile: target ~_TARGET_TILE_BYTES per x buffer."""
    align = _sublane_align(itemsize)
    bb = (_TARGET_TILE_BYTES // max(1, row_vmem_bytes)) // align * align
    bb = max(align, bb)
    bb = min(bb, _round_up(rows, align))          # don't over-pad tiny batches
    nb = _cdiv(rows, bb)
    if nb > 1 and nb % 2 == 1:
        # Keep the parallel grid axis even so v7x's 2 TensorCores split it evenly.
        nb += 1
        bb = max(align, _round_up(_cdiv(rows, nb), align))
    return bb


def _choose_block_k(k, itemsize, block_k=None):
    """Split the contraction dim only when a full-K row would shrink the batch
    tile below ~256 rows."""
    if block_k is not None:
        bk = min(_round_up(max(block_k, _LANE), _LANE), _round_up(k, _LANE))
        return bk, _cdiv(k, bk)
    if k * itemsize <= _TARGET_TILE_BYTES // 256:
        return k, 1
    target_bk = max(_LANE, (_MAX_KBLOCK_BYTES // itemsize) // _LANE * _LANE)
    num_k = _cdiv(k, target_bk)
    bk = _round_up(_cdiv(k, num_k), _LANE)
    num_k = _cdiv(k, bk)
    return bk, num_k


def _probe_kernel(x_ref, w_ref, b_ref, o_ref, acc_ref):
    # x_ref:   (bb, bk) activation tile (large, streaming)
    # w_ref:   (bk, n)  weight tile (resident / tiny)
    # b_ref:   (1,)     bias scalar in SMEM
    # o_ref:   (bb, n)  logits tile
    # acc_ref: (bb, n)  f32 accumulator, resident across the K grid axis
    k = pl.program_id(1)

    @pl.when(k == 0)
    def _init():
        acc_ref[...] = jnp.zeros_like(acc_ref)

    # MXU-canonical (M,K)@(K,N): the big x tile is never the transposed operand.
    acc_ref[...] += jnp.dot(
        x_ref[...], w_ref[...], preferred_element_type=jnp.float32
    )

    @pl.when(k == pl.num_programs(1) - 1)
    def _finalize():
        o_ref[...] = (acc_ref[...] + b_ref[0].astype(jnp.float32)).astype(o_ref.dtype)


@functools.partial(jax.jit, static_argnames=("block_rows", "block_k"))
def probe_forward(x, weight, bias, *, block_rows=None, block_k=None):
    """x: [..., D], weight: [1, D] (nn.Linear layout), bias: [1] -> [...]."""
    lead_shape = x.shape[:-1]
    D = x.shape[-1]
    x2 = x.reshape(-1, D)
    B = x2.shape[0]
    dtype = x2.dtype
    itemsize = jnp.dtype(dtype).itemsize
    align = _sublane_align(itemsize)

    # Small-D lane packing: fold g = 128//D consecutive samples into one
    # lane-dense 128-wide row; contract against a (128, g) block-diagonal weight.
    if D < _LANE and _LANE % D == 0:
        g = _LANE // D
        k_dim = _LANE
        n_out = g
        w_flat = weight.reshape(D).astype(dtype)
        eye = jnp.eye(g, dtype=dtype)
        w_eff = (eye[:, None, :] * w_flat[None, :, None]).reshape(k_dim, n_out)
    else:
        g = 1
        k_dim = D
        n_out = 1
        w_eff = weight.reshape(D, 1).astype(dtype)

    bk, num_k = _choose_block_k(k_dim, itemsize, block_k)
    k_pad = bk * num_k

    rows = _cdiv(B, g)
    row_vmem_bytes = _round_up(bk, _LANE) * itemsize
    if block_rows is not None:
        bb = _round_up(max(int(block_rows), align), align)
    else:
        bb = _choose_block_rows(rows, row_vmem_bytes, itemsize)
    num_rb = _cdiv(rows, bb)
    rows_pad = num_rb * bb

    # Zero-pad: padded rows evaluate to `bias` and are sliced off below; padded
    # K columns contribute 0 to the dot product.
    b_pad = rows_pad * g
    x_p = x2
    if b_pad != B:
        x_p = jnp.pad(x_p, ((0, b_pad - B), (0, 0)))
    x_p = x_p.reshape(rows_pad, g * D)
    if k_pad != k_dim:
        x_p = jnp.pad(x_p, ((0, 0), (0, k_pad - k_dim)))
        w_eff = jnp.pad(w_eff, ((0, k_pad - k_dim), (0, 0)))

    b1 = bias.reshape(1)

    # Deeper x pipeline only when there is enough streaming work to hide DMA
    # issue latency / step bubbles.
    x_index_map = lambda i, k: (i, k)
    n_x_buf = 2
    if num_rb * num_k >= 4:
        try:
            x_spec = pl.BlockSpec((bb, bk), x_index_map, pipeline_mode=pl.Buffered(3))
            n_x_buf = 3
        except (TypeError, AttributeError):  # pipeline_mode unsupported -> default 2
            x_spec = pl.BlockSpec((bb, bk), x_index_map)
    else:
        x_spec = pl.BlockSpec((bb, bk), x_index_map)

    # Request only the VMEM this kernel needs (leave real headroom on v7x's 64 MiB).
    x_tile = bb * _round_up(bk, _LANE) * itemsize
    w_tile = _round_up(bk, align) * _LANE * itemsize
    o_tile = bb * _LANE * itemsize
    acc_tile = bb * _LANE * 4
    needed = n_x_buf * x_tile + 2 * w_tile + 2 * o_tile + acc_tile + (2 << 20)
    vmem_limit = int(min(max(needed, 24 << 20), 48 << 20))
    if needed > vmem_limit:
        vmem_limit = int(needed + (2 << 20))

    out = pl.pallas_call(
        _probe_kernel,
        out_shape=jax.ShapeDtypeStruct((rows_pad, n_out), dtype),
        grid_spec=pltpu.PrefetchScalarGridSpec(
            num_scalar_prefetch=0,
            grid=(num_rb, num_k),                      # reduction axis last
            in_specs=[
                x_spec,                                # streaming x tiles
                pl.BlockSpec((bk, n_out), lambda i, k: (k, 0)),   # weight tile
                pl.BlockSpec(memory_space=pltpu.MemorySpace.SMEM),  # bias scalar
            ],
            out_specs=pl.BlockSpec((bb, n_out), lambda i, k: (i, 0)),
            scratch_shapes=[pltpu.VMEM((bb, n_out), jnp.float32)],
        ),
        compiler_params=pltpu.CompilerParams(
            dimension_semantics=("parallel", "arbitrary"),
            vmem_limit_bytes=vmem_limit,
        ),
    )(x_p, w_eff, b1)

    # (rows_pad, g) row-major flattens back to original sample order; drop padding.
    return out.reshape(-1)[:B].reshape(lead_shape)


if __name__ == "__main__":
    key = jax.random.PRNGKey(0)
    kx, kw, kb, kx2, kx3, kx4, kw2, kw3 = jax.random.split(key, 8)
    dtype = jnp.float32

    def ref(x, w, b):
        return (x @ w.T + b)[..., 0]

    # Case 1: module shapes (activation_dim=32) -> small-D lane-packed path.
    D = 32
    w = jax.random.normal(kw, (1, D), dtype=dtype) / jnp.sqrt(D)
    b = jax.random.normal(kb, (1,), dtype=dtype) * 0.01
    x = jax.random.normal(kx, (8, D), dtype=dtype)
    y = jax.block_until_ready(probe_forward(x, w, b))
    assert y.shape == (8,)
    assert jnp.allclose(y, ref(x, w, b), atol=1e-5, rtol=1e-5)

    # Case 2: batch not divisible by the pack factor / block size (padding path).
    x2 = jax.random.normal(kx2, (20, D), dtype=dtype)
    y2 = jax.block_until_ready(probe_forward(x2, w, b))
    assert y2.shape == (20,)
    assert jnp.allclose(y2, ref(x2, w, b), atol=1e-5, rtol=1e-5)

    # Case 3: several row blocks (forced small block -> exercises multi-step grid
    # and the deeper x pipeline when supported).
    x3 = jax.random.normal(kx3, (100, D), dtype=dtype)
    y3 = jax.block_until_ready(probe_forward(x3, w, b, block_rows=8))
    assert y3.shape == (100,)
    assert jnp.allclose(y3, ref(x3, w, b), atol=1e-5, rtol=1e-5)

    # Case 4: general path (D not a divisor of 128) with non-2D input.
    D4 = 192
    w4 = jax.random.normal(kw2, (1, D4), dtype=dtype) / jnp.sqrt(D4)
    x4 = jax.random.normal(kx4, (2, 8, D4), dtype=dtype)
    y4 = jax.block_until_ready(probe_forward(x4, w4, b))
    assert y4.shape == (2, 8)
    assert jnp.allclose(y4, ref(x4, w4, b), atol=1e-4, rtol=1e-4)

    # Case 5: K-tiled reduction path (forced block_k) with f32 accumulator.
    D5 = 384
    w5 = jax.random.normal(kw3, (1, D5), dtype=dtype) / jnp.sqrt(D5)
    x5 = jax.random.normal(jax.random.PRNGKey(5), (24, D5), dtype=dtype)
    y5 = jax.block_until_ready(probe_forward(x5, w5, b, block_k=128))
    assert y5.shape == (24,)
    assert jnp.allclose(y5, ref(x5, w5, b), atol=1e-4, rtol=1e-4)

    print("KERNEL_OK")
</pallas_src>

<mosaic_0001>
module attributes {stable_mosaic.version = 11 : i64} {
  func.func @_probe_kernel(%arg0: i32, %arg1: i32, %arg2: memref<8x128xf32, #tpu.memory_space<vmem>>, %arg3: memref<128x4xf32, #tpu.memory_space<vmem>>, %arg4: memref<1xf32, #tpu.memory_space<smem>>, %arg5: memref<8x4xf32, #tpu.memory_space<vmem>>, %arg6: memref<8x4xf32, #tpu.memory_space<vmem>>) attributes {dimension_semantics = [#tpu.dimension_semantics<parallel>, #tpu.dimension_semantics<arbitrary>], iteration_bounds = array<i64: 1, 1>, scalar_prefetch = 0 : i64, scratch_operands = 1 : i64, tpu.core_type = #tpu.core_type<tc>, window_params = [{transform_indices = @transform_0, window_bounds = array<i64: 8, 128>}, {transform_indices = @transform_1, window_bounds = array<i64: 128, 4>}, {transform_indices = @transform_2, window_bounds = array<i64: 1>}, {transform_indices = @transform_3, window_bounds = array<i64: 8, 4>}]} {
    %c0_i32 = arith.constant 0 : i32
    %0 = arith.cmpi eq, %arg1, %c0_i32 : i32
    %1 = arith.extui %0 : i1 to i32
    %c0_i32_0 = arith.constant 0 : i32
    %2 = arith.cmpi ne, %1, %c0_i32_0 : i32
    scf.if %2 {
      %cst_10 = arith.constant 0.000000e+00 : f32
      %12 = vector.broadcast %cst_10 : f32 to vector<8x4xf32>
      %c0_11 = arith.constant 0 : index
      %c0_12 = arith.constant 0 : index
      %13 = vector.load %arg6[%c0_11, %c0_12] : memref<8x4xf32, #tpu.memory_space<vmem>>, vector<8x4xf32>
      tpu.vector_store %arg6[%c0_11, %c0_12], %12 {strides = array<i32>} : memref<8x4xf32, #tpu.memory_space<vmem>>, vector<8x4xf32>,
    } else {
    }
    %c0 = arith.constant 0 : index
    %c0_1 = arith.constant 0 : index
    %3 = vector.load %arg6[%c0, %c0_1] : memref<8x4xf32, #tpu.memory_space<vmem>>, vector<8x4xf32>
    %c0_2 = arith.constant 0 : index
    %c0_3 = arith.constant 0 : index
    %4 = vector.load %arg2[%c0_2, %c0_3] : memref<8x128xf32, #tpu.memory_space<vmem>>, vector<8x128xf32>
    %c0_4 = arith.constant 0 : index
    %c0_5 = arith.constant 0 : index
    %5 = vector.load %arg3[%c0_4, %c0_5] : memref<128x4xf32, #tpu.memory_space<vmem>>, vector<128x4xf32>
    %cst = arith.constant dense<0.000000e+00> : vector<8x4xf32>
    %6 = tpu.matmul %4, %5, %cst {dimension_numbers = #tpu.dot_dimension_numbers<[1], [0], [0], [1], [0, 0, 1, 1], [], []>} : vector<8x128xf32>, vector<128x4xf32>, vector<8x4xf32> -> vector<8x4xf32>
    %7 = arith.addf %3, %6 : vector<8x4xf32>
    %c0_6 = arith.constant 0 : index
    %c0_7 = arith.constant 0 : index
    %8 = vector.load %arg6[%c0_6, %c0_7] : memref<8x4xf32, #tpu.memory_space<vmem>>, vector<8x4xf32>
    tpu.vector_store %arg6[%c0_6, %c0_7], %7 {strides = array<i32>} : memref<8x4xf32, #tpu.memory_space<vmem>>, vector<8x4xf32>,
    %c0_i32_8 = arith.constant 0 : i32
    %9 = arith.cmpi eq, %arg1, %c0_i32_8 : i32
    %10 = arith.extui %9 : i1 to i32
    %c0_i32_9 = arith.constant 0 : i32
    %11 = arith.cmpi ne, %10, %c0_i32_9 : i32
    scf.if %11 {
      %c0_10 = arith.constant 0 : index
      %c0_11 = arith.constant 0 : index
      %12 = vector.load %arg6[%c0_10, %c0_11] : memref<8x4xf32, #tpu.memory_space<vmem>>, vector<8x4xf32>
      %c0_12 = arith.constant 0 : index
      %13 = memref.load %arg4[%c0_12] : memref<1xf32, #tpu.memory_space<smem>>
      %14 = vector.broadcast %13 : f32 to vector<8x4xf32>
      %15 = arith.addf %12, %14 : vector<8x4xf32>
      %c0_13 = arith.constant 0 : index
      %c0_14 = arith.constant 0 : index
      %16 = vector.load %arg5[%c0_13, %c0_14] : memref<8x4xf32, #tpu.memory_space<vmem>>, vector<8x4xf32>
      tpu.vector_store %arg5[%c0_13, %c0_14], %15 {strides = array<i32>} : memref<8x4xf32, #tpu.memory_space<vmem>>, vector<8x4xf32>,
    } else {
    }
    return
  }
  func.func @transform_0(%arg0: i32, %arg1: i32) -> (i32, i32) {
    %c0_i32 = arith.constant 0 : i32
    return %arg0, %arg1 : i32, i32
  }
  func.func @transform_1(%arg0: i32, %arg1: i32) -> (i32, i32) {
    %c0_i32 = arith.constant 0 : i32
    %c0_i32_0 = arith.constant 0 : i32
    return %arg1, %c0_i32 : i32, i32
  }
  func.func @transform_2(%arg0: i32, %arg1: i32) -> i32 {
    %c0_i32 = arith.constant 0 : i32
    %c0_i32_0 = arith.constant 0 : i32
    return %c0_i32 : i32
  }
  func.func @transform_3(%arg0: i32, %arg1: i32) -> (i32, i32) {
    %c0_i32 = arith.constant 0 : i32
    %c0_i32_0 = arith.constant 0 : i32
    return %arg0, %c0_i32 : i32, i32
  }
}

</mosaic_0001>

<llo_original>
// kernel: probe_forward.1
$region0: #{probe_forward.1}
  #allocation0 [shape = 'u32[]', space=smem, size = 0x4, offset = 0x4, fixed_abs, tag = 'smem constant byte address 0x4 - core index']
  #allocation1 [shape = 'u32[144,128]{1,0:T(1,128)}', space=vmem, size = 0x12000, scoped, tag = 'internal scratch']
  #allocation2 [shape = 'f32[8,4]{1,0:T(8,128)}', space=vmem, size = 0x1000, scoped, tag = 'scratch operand']
  #allocation3 [shape = 'f32[1]{0:T(128)S(6)}', space=smem, size = 0x200, scoped, tag = 'scoped memory for probe_forward.1']
  %s0 = inlined_call_operand.vmem [shape: f32[8,128], index: 0, kind: input, shape index: {}]
  %s1 = inlined_call_operand.vmem [shape: f32[128,4], index: 1, kind: input, shape index: {}]
  %s2 = inlined_call_operand.<no memory space> [shape: f32[1], index: 2, kind: input, shape index: {}]
  %s3 = inlined_call_operand.vmem [shape: f32[8,4], index: 3, kind: output, shape index: {}]
  %s4 = sld [smem:[#allocation0]]
  $region30: #{probe_forward.1} parent=0
    _
  %s6 = ssub.s32 1, %s4
  %s7 = scalar_select 0, %s6, %s4
  %8 = sst [smem:[#allocation3]] %s2
  // Predicated region
  $region2: #{probe_forward.1} parent=0 // pred_check
    _
  $region3: #{probe_forward.1} parent=0 // pred_check_branch
    %10 = sbr.rel (0) target = $region5
  $region4: #{probe_forward.1} parent=0 // pred_region
    _
  $region5: #{probe_forward.1} parent=0 // pred_fallthru
    _
  // Predicated region
  $region6: #{probe_forward.1} parent=0 // pred_check
    _
  $region7: #{probe_forward.1} parent=0 // pred_check_branch
    %12 = sbr.rel (0) target = $region9
  $region8: #{probe_forward.1} parent=0 // pred_region
    _
  $region9: #{probe_forward.1} parent=0 // pred_fallthru
    _
  // Predicated region
  $region10: #{probe_forward.1} parent=0 // pred_check
    _
  $region11: #{probe_forward.1} parent=0 // pred_check_branch
    %14 = sbr.rel (0) target = $region13
  $region12: #{probe_forward.1} parent=0 // pred_region
    _
  $region13: #{probe_forward.1} parent=0 // pred_fallthru
    _
  %p15 = scmp.eq.s32.totalorder 0, 0
  // Predicated region
  $region14: #{probe_forward.1} parent=0 // pred_check
    %p16 = pneg %p15
  $region15: #{probe_forward.1} parent=0 // pred_check_branch
    %18 = sbr.rel (%p16) target = $region17
  $region16: #{probe_forward.1} parent=0 // pred_region
    %vm19 = vcmask 31744
    %20 = vst.msk [vmem:[#allocation2] sm:$0xff] %vm19, 0.0
  $region17: #{probe_forward.1} parent=0 // pred_fallthru
    _
  %v21 = vld [vmem:[#allocation2] sm:$0xff]
  %v22 = vld [vmem:[%s0] sm:$0xff]
  %v23 = vld [vmem:[%s1] sm:$0xff]
  %v24 = vld [vmem:[%s1 + $0x8] sm:$0xff]
  %v25 = vld [vmem:[%s1 + $0x10] sm:$0xff]
  %v26 = vld [vmem:[%s1 + $0x18] sm:$0xff]
  %v27 = vld [vmem:[%s1 + $0x20] sm:$0xff]
  %v28 = vld [vmem:[%s1 + $0x28] sm:$0xff]
  %v29 = vld [vmem:[%s1 + $0x30] sm:$0xff]
  %v30 = vld [vmem:[%s1 + $0x38] sm:$0xff]
  %v31 = vld [vmem:[%s1 + $0x40] sm:$0xff]
  %v32 = vld [vmem:[%s1 + $0x48] sm:$0xff]
  %v33 = vld [vmem:[%s1 + $0x50] sm:$0xff]
  %v34 = vld [vmem:[%s1 + $0x58] sm:$0xff]
  %v35 = vld [vmem:[%s1 + $0x60] sm:$0xff]
  %v36 = vld [vmem:[%s1 + $0x68] sm:$0xff]
  %v37 = vld [vmem:[%s1 + $0x70] sm:$0xff]
  %v38 = vld [vmem:[%s1 + $0x78] sm:$0xff]
  %39 = vmatprep.subr.mxu0 0.0
  %40 = vmatpush1.msra.mxu0 %v23
  %41 = vmatprep.subr.mxu0 0.0
  %42 = vmatpush1.msra.mxu0 %v24
  %43 = vmatprep.subr.mxu0 0.0
  %44 = vmatpush1.msra.mxu0 %v25
  %45 = vmatprep.subr.mxu0 0.0
  %46 = vmatpush1.msra.mxu0 %v26
  %47 = vmatprep.subr.mxu0 0.0
  %48 = vmatpush1.msra.mxu0 %v27
  %49 = vmatprep.subr.mxu0 0.0
  %50 = vmatpush1.msra.mxu0 %v28
  %51 = vmatprep.subr.mxu0 0.0
  %52 = vmatpush1.msra.mxu0 %v29
  %53 = vmatprep.subr.mxu0 0.0
  %54 = vmatpush1.msra.mxu0 %v30
  %55 = vmatprep.subr.mxu0 0.0
  %56 = vmatpush1.msra.mxu0 %v31
  %57 = vmatprep.subr.mxu0 0.0
  %58 = vmatpush1.msra.mxu0 %v32
  %59 = vmatprep.subr.mxu0 0.0
  %60 = vmatpush1.msra.mxu0 %v33
  %61 = vmatprep.subr.mxu0 0.0
  %62 = vmatpush1.msra.mxu0 %v34
  %63 = vmatprep.subr.mxu0 0.0
  %64 = vmatpush1.msra.mxu0 %v35
  %65 = vmatprep.subr.mxu0 0.0
  %66 = vmatpush1.msra.mxu0 %v36
  %67 = vmatprep.subr.mxu0 0.0
  %68 = vmatpush1.msra.mxu0 %v37
  %69 = vmatprep.subr.mxu0 0.0
  %70 = vmatpush1.msra.mxu0 %v38
  %71 = vmatprep.subr.mxu0 0.0
  %72 = vmatpush1.msra.mxu0 0.0
  %73 = vmatprep.subr.mxu0 0.0
  %74 = vmatpush1.msra.mxu0 0.0
  %75 = vmatprep.subr.mxu0 0.0
  %76 = vmatpush1.msra.mxu0 0.0
  %77 = vmatprep.subr.mxu0 0.0
  %78 = vmatpush1.msra.mxu0 0.0
  %79 = vmatprep.subr.mxu0 0.0
  %80 = vmatpush1.msra.mxu0 0.0
  %81 = vmatprep.subr.mxu0 0.0
  %82 = vmatpush1.msra.mxu0 0.0
  %83 = vmatprep.subr.mxu0 0.0
  %84 = vmatpush1.msra.mxu0 0.0
  %85 = vmatprep.subr.mxu0 0.0
  %86 = vmatpush1.msra.mxu0 0.0
  %87 = vmatprep.subr.mxu0 0.0
  %88 = vmatpush1.msra.mxu0 0.0
  %89 = vmatprep.subr.mxu0 0.0
  %90 = vmatpush1.msra.mxu0 0.0
  %91 = vmatprep.subr.mxu0 0.0
  %92 = vmatpush1.msra.mxu0 0.0
  %93 = vmatprep.subr.mxu0 0.0
  %94 = vmatpush1.msra.mxu0 0.0
  %95 = vmatprep.subr.mxu0 0.0
  %96 = vmatpush1.msra.mxu0 0.0
  %97 = vmatprep.subr.mxu0 0.0
  %98 = vmatpush1.msra.mxu0 0.0
  %99 = vmatprep.subr.mxu0 0.0
  %100 = vmatpush1.msra.mxu0 0.0
  %101 = vmatprep.subr.mxu0 0.0
  %102 = vmatpush1.msra.mxu0 0.0
  %103 = vmatprep.mubr.f32.mxu0 0.0
  %104 = vmatmul.mubr.f32.gmra.mrb[0].mxu0 %v22
  %v105 = vpop.f32.mrb[0].mxu0
  %v106 = vadd.f32 0.0, %v105
  %v107 = vpop.f32.mrb[0].mxu0
  %108 = vdwg.mxu0
  %v109 = vadd.f32 %v21, %v106
  %vm110 = vcmask 31744
  %111 = vst.msk [vmem:[#allocation2] sm:$0xff] %vm110, %v109
  // Predicated region
  $region18: #{probe_forward.1} parent=0 // pred_check
    %p112 = pneg %p15
  $region19: #{probe_forward.1} parent=0 // pred_check_branch
    %114 = sbr.rel (%p112) target = $region21
  $region20: #{probe_forward.1} parent=0 // pred_region
    %v115 = vld [vmem:[#allocation2] sm:$0xff]
    %s116 = sld [smem:[#allocation3]]
    %v117 = vstv %s116
    %v118 = vadd.f32 %v115, %v117
    %119 = vst.msk [vmem:[%s3] sm:$0xff] %vm110, %v118
  $region21: #{probe_forward.1} parent=0 // pred_fallthru
    _
  // Predicated region
  $region22: #{probe_forward.1} parent=0 // pred_check
    _
  $region23: #{probe_forward.1} parent=0 // pred_check_branch
    %121 = sbr.rel (0) target = $region25
  $region24: #{probe_forward.1} parent=0 // pred_region
    _
  $region25: #{probe_forward.1} parent=0 // pred_fallthru
    _
  // Predicated region
  $region26: #{probe_forward.1} parent=0 // pred_check
    _
  $region27: #{probe_forward.1} parent=0 // pred_check_branch
    %123 = sbr.rel (0) target = $region29
  $region28: #{probe_forward.1} parent=0 // pred_region
    _
  $region29: #{probe_forward.1} parent=0 // pred_fallthru
    _

</llo_original>
